<compile_context>
chip_gen: v6e
topology: v6e:2x2x1
jax: 0.10.0
libtpu: 0.0.40
codegen_flags: <defaults>
</compile_context>

<pallas_src>
import functools
import math

import jax
import jax.numpy as jnp
from jax.experimental import pallas as pl
from jax.experimental.pallas import tpu as pltpu

OUTPUT_SIZE = 2
LABEL_SMOOTHING = 0.1


def _partial_loss_kernel(pred_ref, target_ref, out_ref, *,
                         smooth_val, conf_minus_smooth, inv_n, row_block, batch):
    """Per-block partial of  -inv_n * sum_b [ s*sum_c pred[b,c] + (c-s)*pred[b, tgt_b] ]."""
    i = pl.program_id(0)

    pred = pred_ref[...].astype(jnp.float32)            # (TB, C), upcast in-kernel
    tgt = target_ref[...]                                # (TB, 1) int32

    # torch's scatter_(1, target, confidence) expressed lane-wise: one-hot via iota.
    class_ids = jax.lax.broadcasted_iota(jnp.int32, pred.shape, 1)
    sel = class_ids == tgt                               # (TB, C)

    row_all = jnp.sum(pred, axis=1, keepdims=True)                       # (TB, 1)
    row_tgt = jnp.sum(jnp.where(sel, pred, 0.0), axis=1, keepdims=True)  # (TB, 1)

    row_term = -(smooth_val * row_all + conf_minus_smooth * row_tgt)     # (TB, 1)

    # Mask rows past the true batch size (last, possibly partial, block).
    rows = jax.lax.broadcasted_iota(jnp.int32, row_term.shape, 0) + i * row_block
    row_term = jnp.where(rows < batch, row_term, 0.0)

    partial = jnp.sum(row_term, keepdims=True) * inv_n                   # (1, 1)
    # Splat the scalar over the whole (1, 8, 128) tile -> unmasked store;
    # the wrapper reads partials[:, 0, 0].
    out_ref[...] = jnp.broadcast_to(partial.reshape(1, 1, 1), out_ref.shape)


def _choose_row_block(batch, num_classes, itemsize):
    """Largest batch-row block whose double-buffered pred tile stays well under the
    v7x scoped-VMEM default (trivially fits v5e/v6e), respecting (8,128) tiling."""
    lane_bytes = max(pl.cdiv(num_classes, 128) * 128, 128) * max(itemsize, 4)
    per_buf_budget = 8 * 1024 * 1024          # bytes; conservative for v7x (64 MiB phys)
    tb = min(1024, batch)
    while tb > 8 and tb * lane_bytes * 2 > per_buf_budget:
        tb //= 2
    if tb >= batch:
        return batch                           # single block == full dims, always legal
    sub = 16 if itemsize < 4 else 8            # sublane packing for sub-32-bit dtypes
    return max(sub, (tb // sub) * sub)


def label_smoothing_loss(pred, target, *, output_size=OUTPUT_SIZE,
                         label_smoothing=LABEL_SMOOTHING):
    assert 0.0 <= label_smoothing <= 1.0, \
        'Label smoothing parameter takes values in the range [0, 1]'
    assert output_size >= 2, 'Need >= 2 classes (smooth_val divides by output_size - 1)'
    B, C = pred.shape
    assert C == output_size

    confidence = 1.0 - label_smoothing
    smooth_val = label_smoothing / (output_size - 1)
    inv_n = 1.0 / float(B * C)
    # sum(q * log q) is a compile-time constant (0*log0 := 0 handled here, covers
    # label_smoothing == 0.0 and == 1.0).
    c_logc = confidence * math.log(confidence) if confidence > 0.0 else 0.0
    s_logs = smooth_val * math.log(smooth_val) if smooth_val > 0.0 else 0.0
    const_term = float(B) * (c_logc + (output_size - 1) * s_logs) * inv_n

    tb = _choose_row_block(B, C, pred.dtype.itemsize)
    nb = pl.cdiv(B, tb)

    kernel = functools.partial(
        _partial_loss_kernel,
        smooth_val=smooth_val,
        conf_minus_smooth=confidence - smooth_val,
        inv_n=inv_n, row_block=tb, batch=B)

    partials = pl.pallas_call(
        kernel,
        out_shape=jax.ShapeDtypeStruct((nb, 8, 128), jnp.float32),
        grid=(nb,),
        in_specs=[pl.BlockSpec((tb, C), lambda i: (i, 0)),
                  pl.BlockSpec((tb, 1), lambda i: (i, 0))],
        out_specs=pl.BlockSpec((1, 8, 128), lambda i: (i, 0, 0)),
        compiler_params=pltpu.CompilerParams(dimension_semantics=("parallel",)),
    )(pred, target.astype(jnp.int32).reshape(B, 1))

    # Tiny trailing reduce over per-block partials + analytic q*log(q) term.
    return jnp.sum(partials[:, 0, 0]) + const_term


def _reference(pred, target, output_size, label_smoothing):
    """Pure-JAX reference mirroring torch: scatter smoothed one-hot + KLDiv mean."""
    confidence = 1.0 - label_smoothing
    smooth_val = label_smoothing / (output_size - 1)
    p = pred.astype(jnp.float32)
    q = jnp.full(p.shape, smooth_val, jnp.float32)
    q = q.at[jnp.arange(p.shape[0]), target].set(confidence)
    pw = jnp.where(q > 0, q * (jnp.log(jnp.where(q > 0, q, 1.0)) - p), 0.0)
    return jnp.mean(pw)


if __name__ == "__main__":
    key = jax.random.PRNGKey(0)
    k_logits, k_tgt = jax.random.split(key)

    B = 8  # batch of log-prob rows, matching the module's docstring example scale
    logits = jax.random.normal(k_logits, (B, OUTPUT_SIZE), jnp.float32)
    pred = jax.nn.log_softmax(logits, axis=-1)            # (B, C) log-probabilities
    target = jax.random.randint(k_tgt, (B,), 0, OUTPUT_SIZE, dtype=jnp.int32)

    loss = label_smoothing_loss(pred, target)
    loss = jax.block_until_ready(loss)

    ref = _reference(pred, target, OUTPUT_SIZE, LABEL_SMOOTHING)
    assert loss.shape == ()
    assert bool(jnp.isfinite(loss))
    assert bool(jnp.allclose(loss, ref, rtol=1e-5, atol=1e-6)), (float(loss), float(ref))
    print("KERNEL_OK")
</pallas_src>

<mosaic_0001>
module attributes {stable_mosaic.version = 11 : i64} {
  func.func @_partial_loss_kernel(%arg0: i32, %arg1: memref<8x2xf32, #tpu.memory_space<vmem>>, %arg2: memref<8x1xi32, #tpu.memory_space<vmem>>, %arg3: memref<1x8x128xf32, #tpu.memory_space<vmem>>) attributes {dimension_semantics = [#tpu.dimension_semantics<parallel>], iteration_bounds = array<i64: 1>, scalar_prefetch = 0 : i64, scratch_operands = 0 : i64, tpu.core_type = #tpu.core_type<tc>, window_params = [{transform_indices = @transform_0, window_bounds = array<i64: 8, 2>}, {transform_indices = @transform_1, window_bounds = array<i64: 8, 1>}, {transform_indices = @transform_2, window_bounds = array<i64: 1, 8, 128>}]} {
    %c0 = arith.constant 0 : index
    %c0_0 = arith.constant 0 : index
    %0 = vector.load %arg1[%c0, %c0_0] : memref<8x2xf32, #tpu.memory_space<vmem>>, vector<8x2xf32>
    %c0_1 = arith.constant 0 : index
    %c0_2 = arith.constant 0 : index
    %1 = vector.load %arg2[%c0_1, %c0_2] : memref<8x1xi32, #tpu.memory_space<vmem>>, vector<8x1xi32>
    %2 = tpu.iota {dimensions = array<i32: 1>} : vector<8x2xi32>
    %3 = vector.broadcast %1 : vector<8x1xi32> to vector<8x2xi32>
    %4 = arith.cmpi eq, %2, %3 : vector<8x2xi32>
    %cst = arith.constant dense<0.000000e+00> : vector<8xf32>
    %5 = vector.multi_reduction <add>, %0, %cst [1] : vector<8x2xf32> to vector<8xf32>
    %6 = vector.shape_cast %5 : vector<8xf32> to vector<8x1xf32>
    %cst_3 = arith.constant 0.000000e+00 : f32
    %7 = vector.broadcast %cst_3 : f32 to vector<8x2xf32>
    %8 = arith.select %4, %0, %7 : vector<8x2xi1>, vector<8x2xf32>
    %cst_4 = arith.constant dense<0.000000e+00> : vector<8xf32>
    %9 = vector.multi_reduction <add>, %8, %cst_4 [1] : vector<8x2xf32> to vector<8xf32>
    %10 = vector.shape_cast %9 : vector<8xf32> to vector<8x1xf32>
    %cst_5 = arith.constant 1.000000e-01 : f32
    %11 = vector.broadcast %cst_5 : f32 to vector<8x1xf32>
    %12 = arith.mulf %11, %6 : vector<8x1xf32>
    %cst_6 = arith.constant 8.000000e-01 : f32
    %13 = vector.broadcast %cst_6 : f32 to vector<8x1xf32>
    %14 = arith.mulf %13, %10 : vector<8x1xf32>
    %15 = arith.addf %12, %14 : vector<8x1xf32>
    %cst_7 = arith.constant 0.000000e+00 : f32
    %16 = vector.broadcast %cst_7 : f32 to vector<8x1xf32>
    %17 = arith.subf %16, %15 : vector<8x1xf32>
    %18 = tpu.iota {dimensions = array<i32: 0>} : vector<8x1xi32>
    %c8_i32 = arith.constant 8 : i32
    %19 = arith.muli %arg0, %c8_i32 : i32
    %20 = vector.broadcast %19 : i32 to vector<8x1xi32>
    %21 = arith.addi %18, %20 : vector<8x1xi32>
    %c8_i32_8 = arith.constant 8 : i32
    %22 = vector.broadcast %c8_i32_8 : i32 to vector<8x1xi32>
    %23 = arith.cmpi slt, %21, %22 : vector<8x1xi32>
    %cst_9 = arith.constant 0.000000e+00 : f32
    %24 = vector.broadcast %cst_9 : f32 to vector<8x1xf32>
    %25 = arith.select %23, %17, %24 : vector<8x1xi1>, vector<8x1xf32>
    %26 = vector.shape_cast %25 : vector<8x1xf32> to vector<1x8x1xf32>
    %cst_10 = arith.constant dense<0.000000e+00> : vector<1xf32>
    %27 = vector.multi_reduction <add>, %26, %cst_10 [1, 2] : vector<1x8x1xf32> to vector<1xf32>
    %28 = vector.shape_cast %27 : vector<1xf32> to vector<1x1x1xf32>
    %29 = vector.extract %28[0, 0, 0] : f32 from vector<1x1x1xf32>
    %30 = vector.broadcast %29 : f32 to vector<1x1xf32>
    %cst_11 = arith.constant 6.250000e-02 : f32
    %31 = vector.broadcast %cst_11 : f32 to vector<1x1xf32>
    %32 = arith.mulf %30, %31 : vector<1x1xf32>
    %33 = vector.shape_cast %32 : vector<1x1xf32> to vector<1x1x1xf32>
    %34 = vector.shape_cast %33 : vector<1x1x1xf32> to vector<1x1x1xf32>
    %35 = vector.broadcast %34 : vector<1x1x1xf32> to vector<1x8x128xf32>
    %c0_12 = arith.constant 0 : index
    %c0_13 = arith.constant 0 : index
    %c0_14 = arith.constant 0 : index
    %36 = vector.load %arg3[%c0_12, %c0_13, %c0_14] : memref<1x8x128xf32, #tpu.memory_space<vmem>>, vector<1x8x128xf32>
    tpu.vector_store %arg3[%c0_12, %c0_13, %c0_14], %35 {strides = array<i32>} : memref<1x8x128xf32, #tpu.memory_space<vmem>>, vector<1x8x128xf32>,
    return
  }
  func.func @transform_0(%arg0: i32) -> (i32, i32) {
    %c0_i32 = arith.constant 0 : i32
    %c0_i32_0 = arith.constant 0 : i32
    return %arg0, %c0_i32 : i32, i32
  }
  func.func @transform_1(%arg0: i32) -> (i32, i32) {
    %c0_i32 = arith.constant 0 : i32
    %c0_i32_0 = arith.constant 0 : i32
    return %arg0, %c0_i32 : i32, i32
  }
  func.func @transform_2(%arg0: i32) -> (i32, i32, i32) {
    %c0_i32 = arith.constant 0 : i32
    %c0_i32_0 = arith.constant 0 : i32
    %c0_i32_1 = arith.constant 0 : i32
    return %arg0, %c0_i32, %c0_i32_0 : i32, i32, i32
  }
}

</mosaic_0001>

<llo_original>
// kernel: tpu_custom_call.1
$region0: #{tpu_custom_call.1}
  #allocation0 [shape = 'u32[]', space=smem, size = 0x4, offset = 0x4, fixed_abs, tag = 'smem constant byte address 0x4 - core index']
  #allocation1 [shape = 'u32[144,128]{1,0:T(1,128)}', space=vmem, size = 0x12000, scoped, tag = 'internal scratch']
  %s0 = inlined_call_operand.vmem [shape: f32[8,2], index: 0, kind: input, shape index: {}]
  %s1 = inlined_call_operand.vmem [shape: s32[8,1], index: 1, kind: input, shape index: {}]
  %s2 = inlined_call_operand.hbm [shape: f32[1,8,128], index: 2, kind: output, shape index: {}]
  %s3 = sld [smem:[#allocation0]]
  $region18: #{tpu_custom_call.1} parent=0
    _
  %s5 = ssub.s32 1, %s3
  %s6 = scalar_select 0, %s5, %s3
  $region1: #{tpu_custom_call.1} parent=0
    #allocation2 [shape = 'u8[4096]{0}', space=vmem, size = 0x1000, scoped, tag = 'output window, operand 0, single buffered']
    #allocation3 [shape = 's32[1]{0}', space=sflag, size = 0x4, scoped, tag = 'scoped memory for tpu_custom_call.1']
    %7 = vsyncpa [#allocation3], 0
    // Predicated region
    $region2: #{tpu_custom_call.1} parent=1 // pred_check
      _
    $region3: #{tpu_custom_call.1} parent=1 // pred_check_branch
      %9 = sbr.rel (0) target = $region5
    $region4: #{tpu_custom_call.1} parent=1 // pred_region
      _
    $region5: #{tpu_custom_call.1} parent=1 // pred_fallthru
      _
    // Predicated region
    $region6: #{tpu_custom_call.1} parent=1 // pred_check
      _
    $region7: #{tpu_custom_call.1} parent=1 // pred_check_branch
      %11 = sbr.rel (0) target = $region9
    $region8: #{tpu_custom_call.1} parent=1 // pred_region
      _
    $region9: #{tpu_custom_call.1} parent=1 // pred_fallthru
      _
    %v12 = vld [vmem:[%s0] sm:$0xff]
    %v13 = vld [vmem:[%s1] sm:$0xff]
    %v14 = vlaneseq
    %v15 = vand.u32 %v14, 127
    %16 = vset.pattern.permute.xlu0 0
    %17 = vperm.xlu0 %16, %v13
    %v18 = vpop.permute.xlu0 %17
    %vm19 = vcmp.eq.s32.totalorder %v15, %v18
    %vm20 = vcmask 15360
    %v21 = vsel %vm20, %v12, 0.0
    %22 = vadd.xlane.f32.xlu0 %v21
    %v23 = vpop.xlane.xlu0 %22
    %v24 = vsel %vm19, %v12, 0.0
    %v25 = vsel %vm20, %v24, 0.0
    %26 = vadd.xlane.f32.xlu0 %v25
    %v27 = vpop.xlane.xlu0 %26
    %v28 = vmul.f32 %v23, 0.1
    %v29 = vmul.f32 %v27, 0.8
    %v30 = vadd.f32 %v28, %v29
    %v31 = vsub.f32 0.0, %v30
    %v32 = vlaneseq
    %v33 = vshrl.u32 %v32, 7
    %s34 = smul.u32 0, 8
    %v35 = vstv %s34
    %v36 = vadd.s32 %v33, %v35
    %vm37 = vcmp.lt.s32.totalorder %v36, 8
    %v38 = vsel %vm37, %v31, 0.0
    %vm39 = vcmask 7168
    %v40 = vsel %vm39, %v38, 0.0
    %41 = vadd.xlane.f32.xlu0 %v40
    %v42 = vpop.xlane.xlu0 %41
    %v43 = vrot.slane %v42, 4
    %v44 = vadd.f32 %v42, %v43
    %v45 = vrot.slane %v44, 2
    %v46 = vadd.f32 %v44, %v45
    %v47 = vrot.slane %v46, 1
    %v48 = vadd.f32 %v46, %v47
    %s49 = vtos %v48
    %v50 = vstv %s49
    %v51 = vmul.f32 %v50, 0.0625
    %52 = vst [vmem:[#allocation2] sm:$0xff] %v51
    // Predicated region
    $region10: #{tpu_custom_call.1} parent=1 // pred_check
      _
    $region11: #{tpu_custom_call.1} parent=1 // pred_check_branch
      %54 = sbr.rel (0) target = $region13
    $region12: #{tpu_custom_call.1} parent=1 // pred_region
      %s56 = ssub.s32 128, 128
      %57 = vsyncadd [#allocation3], %s56
      %s59 = sshll.u32 [#allocation2], 4
      %s60 = int_to_ptr.vmem [resolvable:$true] %s59
      %62 = dma.vmem_to_hbm [thread:$0]  %s60, 128, %s2, [#allocation3]
    $region13: #{tpu_custom_call.1} parent=1 // pred_fallthru
      _
    // Predicated region
    $region14: #{tpu_custom_call.1} parent=1 // pred_check
      _
    $region15: #{tpu_custom_call.1} parent=1 // pred_check_branch
      %64 = sbr.rel (0) target = $region17
    $region16: #{tpu_custom_call.1} parent=1 // pred_region
      %65 = dma.done [#allocation3], 128
    $region17: #{tpu_custom_call.1} parent=1 // pred_fallthru
      _
    %66 = vsyncpa [#allocation3], 1

</llo_original>
